<compile_context>
chip_gen: v7x
topology: tpu7x:2x2x1
jax: 0.10.0
libtpu: 0.0.40
codegen_flags: <defaults>
</compile_context>

<pallas_src>
import jax
import jax.numpy as jnp
from jax.experimental import pallas as pl
from jax.experimental.pallas import tpu as pltpu


def _round_up(x, m):
    return ((x + m - 1) // m) * m


def _vmem_capacity_bytes():
    """Physical per-core VMEM; conservative 64 MiB (v7x) fallback."""
    try:
        return int(pltpu.get_tpu_info().vmem_capacity_bytes)
    except Exception:
        return 64 * 1024 * 1024


def _choose_block_rows(batch, num_classes, itemsize, budget_bytes, max_rows):
    """Largest batch tile whose working set fits the VMEM budget.

    Working set per row ~= 2 * C * itemsize   (double-buffered logit tile)
                         + 2 * C * 4          (f32 `output` / exp temps across
                                                the softmax reduction barrier)
                         + small target/out rows.
    """
    sublane = max(8, 32 // max(itemsize, 1))          # 8 for f32, 16 for bf16
    bytes_per_row = num_classes * (2 * itemsize + 8) + 32
    cap = budget_bytes // max(bytes_per_row, 1)
    cap = max(sublane, (cap // sublane) * sublane)
    limit = min(cap, max_rows)

    if batch <= limit:
        # Whole batch fits one tile.  If it is big enough, split it in two so
        # the "parallel" batch axis can be sharded across v7x's 2 TensorCores
        # (costs only one extra ~0.35us grid step on single-core parts).
        half = _round_up(-(-batch // 2), sublane)
        if sublane <= half < batch:
            return half
        return batch            # single full-dim tile (always a legal block)
    return limit


def _ldam_loss_kernel(m_list_s_ref, target_ref, logit_ref, out_ref):
    logit = logit_ref[...].astype(jnp.float32)        # [TB, C] (upcast if bf16)
    tgt = target_ref[...]                             # [TB, 1] int32
    m_s = m_list_s_ref[...]                           # [1, C] f32, already * s
    tb, c = logit.shape

    # Target-class mask (equivalent to the scatter_ of ones), kept boolean.
    col = jax.lax.broadcasted_iota(jnp.int32, (tb, c), 1)
    is_tgt = col == tgt                                # [TB, C] bool

    # output = where(index, logit - s * m_list[target], logit)
    output = logit - jnp.where(is_tgt, m_s, jnp.float32(0.0))

    # Target logit extracted before the row-max reduction barrier (single pass
    # over `output`, no extra [TB, C] temp kept alive afterwards).
    tgt_logit = jnp.sum(jnp.where(is_tgt, output, jnp.float32(0.0)),
                        axis=-1, keepdims=True)       # [TB, 1]

    # cross_entropy(output, target, reduction='none') = logsumexp - output[tgt]
    row_max = jnp.max(output, axis=-1, keepdims=True)
    sum_exp = jnp.sum(jnp.exp(output - row_max), axis=-1, keepdims=True)
    lse = row_max + jnp.log(sum_exp)

    out_ref[...] = lse - tgt_logit                     # [TB, 1]


def ldam_loss(logit, target, m_list, s=30.0, max_block_rows=None):
    """logit: [B, C] float (f32 or bf16), target: [B] int, m_list: [C] f32
    -> per-sample loss [B] f32 (reduction='none')."""
    B, C = logit.shape
    itemsize = jnp.dtype(logit.dtype).itemsize
    target2d = target.astype(jnp.int32).reshape(B, 1)
    # Pre-scale the margins by s on the host: removes a full-tile multiply.
    m_list_s = (m_list.astype(jnp.float32) * jnp.float32(s)).reshape(1, C)

    vmem_cap = _vmem_capacity_bytes()
    # ~48 MiB scoped limit on v7x (64 MiB physical), ~96 MiB on v5e/v6e.
    vmem_limit = min((vmem_cap * 3) // 4, 112 * 1024 * 1024)
    if max_block_rows is None:
        max_block_rows = 4096 if vmem_cap >= 100 * 1024 * 1024 else 1024

    TB = _choose_block_rows(B, C, itemsize, (vmem_limit * 4) // 5,
                            max_block_rows)
    num_tiles = pl.cdiv(B, TB)   # ragged last tile: Pallas masks OOB writeback

    cost = pl.CostEstimate(
        flops=10 * B * C,
        transcendentals=B * C + B,
        bytes_accessed=B * C * itemsize + 8 * B + 4 * C,
    )

    loss = pl.pallas_call(
        _ldam_loss_kernel,
        out_shape=jax.ShapeDtypeStruct((B, 1), jnp.float32),
        grid=(num_tiles,),
        in_specs=[
            pl.BlockSpec((1, C), lambda i: (0, 0)),    # m_list*s, broadcast
            pl.BlockSpec((TB, 1), lambda i: (i, 0)),   # target tile
            pl.BlockSpec((TB, C), lambda i: (i, 0)),   # logit tile (dbl-buffered)
        ],
        out_specs=pl.BlockSpec((TB, 1), lambda i: (i, 0)),
        compiler_params=pltpu.CompilerParams(
            dimension_semantics=("parallel",),          # megacore sharding
            vmem_limit_bytes=int(vmem_limit),
        ),
        cost_estimate=cost,
    )(m_list_s, target2d, logit)

    return loss[:, 0]


def make_m_list(cls_num_list, max_m=0.5):
    """Deterministic parameter init replicating LDAMLoss.__init__."""
    cls_num = jnp.asarray(cls_num_list, dtype=jnp.float32)
    m = 1.0 / jnp.sqrt(jnp.sqrt(cls_num))
    m = m * (max_m / jnp.max(m))
    return m.astype(jnp.float32)


def _reference_loss(logit_f32, target, m_list, s):
    """Pure-JAX reference with the same semantics as the PyTorch module."""
    C = logit_f32.shape[1]
    one_hot = jax.nn.one_hot(target, C, dtype=jnp.float32)
    batch_m = (one_hot * m_list[None, :]).sum(-1, keepdims=True)
    output = jnp.where(one_hot > 0, logit_f32 - batch_m * s, logit_f32)
    tgt_logit = jnp.where(one_hot > 0, output, 0.0).sum(-1)
    return jax.nn.logsumexp(output, axis=-1) - tgt_logit


if __name__ == "__main__":
    key = jax.random.PRNGKey(0)
    k_logit, k_target, k_cls, k_logit2, k_target2 = jax.random.split(key, 5)

    # --- small case: single tile, f32 ---
    B, C = 8, 16
    cls_num_list = jax.random.randint(k_cls, (C,), minval=5, maxval=500).astype(jnp.float32)
    m_list = make_m_list(cls_num_list, max_m=0.5)

    logit = jax.random.normal(k_logit, (B, C), dtype=jnp.float32)
    target = jax.random.randint(k_target, (B,), minval=0, maxval=C).astype(jnp.int32)

    loss = ldam_loss(logit, target, m_list, s=30.0)
    jax.block_until_ready(loss)
    ref = _reference_loss(logit, target, m_list, 30.0)
    assert jnp.allclose(loss, ref, atol=1e-5, rtol=1e-5), (loss, ref)

    # --- bf16 logits (halved HBM traffic path); reference uses rounded values ---
    logit_bf16 = logit.astype(jnp.bfloat16)
    loss_bf16 = ldam_loss(logit_bf16, target, m_list, s=30.0)
    jax.block_until_ready(loss_bf16)
    ref_bf16 = _reference_loss(logit_bf16.astype(jnp.float32), target, m_list, 30.0)
    assert jnp.allclose(loss_bf16, ref_bf16, atol=1e-4, rtol=1e-4), (loss_bf16, ref_bf16)

    # --- multi-tile + ragged last tile: B=40 with 16-row tiles (3 grid steps) ---
    B2, C2 = 40, 24
    logit2 = jax.random.normal(k_logit2, (B2, C2), dtype=jnp.float32)
    target2 = jax.random.randint(k_target2, (B2,), minval=0, maxval=C2).astype(jnp.int32)
    m_list2 = make_m_list(jnp.linspace(5.0, 500.0, C2), max_m=0.5)

    loss2 = ldam_loss(logit2, target2, m_list2, s=30.0, max_block_rows=16)
    jax.block_until_ready(loss2)
    ref2 = _reference_loss(logit2, target2, m_list2, 30.0)
    assert jnp.allclose(loss2, ref2, atol=1e-5, rtol=1e-5), (loss2, ref2)

    print("KERNEL_OK")
</pallas_src>

<mosaic_0001>
module attributes {stable_mosaic.version = 11 : i64} {
  func.func @_ldam_loss_kernel(%arg0: i32, %arg1: memref<1x16xf32, #tpu.memory_space<vmem>>, %arg2: memref<8x1xi32, #tpu.memory_space<vmem>>, %arg3: memref<8x16xf32, #tpu.memory_space<vmem>>, %arg4: memref<8x1xf32, #tpu.memory_space<vmem>>) attributes {dimension_semantics = [#tpu.dimension_semantics<parallel>], iteration_bounds = array<i64: 1>, scalar_prefetch = 0 : i64, scratch_operands = 0 : i64, tpu.core_type = #tpu.core_type<tc>, window_params = [{pipeline_mode = #tpu.pipeline_mode<synchronous>, transform_indices = @transform_0, window_bounds = array<i64: 1, 16>}, {transform_indices = @transform_1, window_bounds = array<i64: 8, 1>}, {transform_indices = @transform_2, window_bounds = array<i64: 8, 16>}, {transform_indices = @transform_3, window_bounds = array<i64: 8, 1>}]} {
    %c0 = arith.constant 0 : index
    %c0_0 = arith.constant 0 : index
    %0 = vector.load %arg3[%c0, %c0_0] : memref<8x16xf32, #tpu.memory_space<vmem>>, vector<8x16xf32>
    %c0_1 = arith.constant 0 : index
    %c0_2 = arith.constant 0 : index
    %1 = vector.load %arg2[%c0_1, %c0_2] : memref<8x1xi32, #tpu.memory_space<vmem>>, vector<8x1xi32>
    %c0_3 = arith.constant 0 : index
    %c0_4 = arith.constant 0 : index
    %2 = vector.load %arg1[%c0_3, %c0_4] : memref<1x16xf32, #tpu.memory_space<vmem>>, vector<1x16xf32>
    %3 = tpu.iota {dimensions = array<i32: 1>} : vector<8x16xi32>
    %4 = vector.broadcast %1 : vector<8x1xi32> to vector<8x16xi32>
    %5 = arith.cmpi eq, %3, %4 : vector<8x16xi32>
    %cst = arith.constant 0.000000e+00 : f32
    %6 = vector.shape_cast %2 : vector<1x16xf32> to vector<1x16xf32>
    %7 = vector.broadcast %6 : vector<1x16xf32> to vector<8x16xf32>
    %8 = vector.broadcast %cst : f32 to vector<8x16xf32>
    %9 = arith.select %5, %7, %8 : vector<8x16xi1>, vector<8x16xf32>
    %10 = arith.subf %0, %9 : vector<8x16xf32>
    %cst_5 = arith.constant 0.000000e+00 : f32
    %11 = vector.broadcast %cst_5 : f32 to vector<8x16xf32>
    %12 = arith.select %5, %10, %11 : vector<8x16xi1>, vector<8x16xf32>
    %cst_6 = arith.constant dense<0.000000e+00> : vector<8xf32>
    %13 = vector.multi_reduction <add>, %12, %cst_6 [1] : vector<8x16xf32> to vector<8xf32>
    %14 = vector.shape_cast %13 : vector<8xf32> to vector<8x1xf32>
    %cst_7 = arith.constant dense<0xFF800000> : vector<8xf32>
    %15 = vector.multi_reduction <maximumf>, %10, %cst_7 [1] : vector<8x16xf32> to vector<8xf32>
    %16 = vector.shape_cast %15 : vector<8xf32> to vector<8x1xf32>
    %17 = vector.broadcast %16 : vector<8x1xf32> to vector<8x16xf32>
    %18 = arith.subf %10, %17 : vector<8x16xf32>
    %19 = math.exp %18 : vector<8x16xf32>
    %cst_8 = arith.constant dense<0.000000e+00> : vector<8xf32>
    %20 = vector.multi_reduction <add>, %19, %cst_8 [1] : vector<8x16xf32> to vector<8xf32>
    %21 = vector.shape_cast %20 : vector<8xf32> to vector<8x1xf32>
    %22 = math.log %21 : vector<8x1xf32>
    %23 = arith.addf %16, %22 : vector<8x1xf32>
    %24 = arith.subf %23, %14 : vector<8x1xf32>
    %c0_9 = arith.constant 0 : index
    %c0_10 = arith.constant 0 : index
    %25 = vector.load %arg4[%c0_9, %c0_10] : memref<8x1xf32, #tpu.memory_space<vmem>>, vector<8x1xf32>
    tpu.vector_store %arg4[%c0_9, %c0_10], %24 {strides = array<i32>} : memref<8x1xf32, #tpu.memory_space<vmem>>, vector<8x1xf32>,
    return
  }
  func.func @transform_0(%arg0: i32) -> (i32, i32) {
    %c0_i32 = arith.constant 0 : i32
    %c0_i32_0 = arith.constant 0 : i32
    %c0_i32_1 = arith.constant 0 : i32
    return %c0_i32, %c0_i32_0 : i32, i32
  }
  func.func @transform_1(%arg0: i32) -> (i32, i32) {
    %c0_i32 = arith.constant 0 : i32
    %c0_i32_0 = arith.constant 0 : i32
    return %arg0, %c0_i32 : i32, i32
  }
  func.func @transform_2(%arg0: i32) -> (i32, i32) {
    %c0_i32 = arith.constant 0 : i32
    %c0_i32_0 = arith.constant 0 : i32
    return %arg0, %c0_i32 : i32, i32
  }
  func.func @transform_3(%arg0: i32) -> (i32, i32) {
    %c0_i32 = arith.constant 0 : i32
    %c0_i32_0 = arith.constant 0 : i32
    return %arg0, %c0_i32 : i32, i32
  }
}

</mosaic_0001>

<llo_original>
// kernel: tpu_custom_call.1
$region0: #{tpu_custom_call.1}
  #allocation0 [shape = 'u32[]', space=smem, size = 0x4, offset = 0x4, fixed_abs, tag = 'smem constant byte address 0x4 - core index']
  #allocation1 [shape = 'u32[144,128]{1,0:T(1,128)}', space=vmem, size = 0x12000, scoped, tag = 'internal scratch']
  %s0 = inlined_call_operand.vmem [shape: f32[1,16], index: 0, kind: input, shape index: {}]
  %s1 = inlined_call_operand.vmem [shape: s32[8,1], index: 1, kind: input, shape index: {}]
  %s2 = inlined_call_operand.vmem [shape: f32[8,16], index: 2, kind: input, shape index: {}]
  %s3 = inlined_call_operand.vmem [shape: f32[8,1], index: 3, kind: output, shape index: {}]
  %s4 = sld [smem:[#allocation0]]
  $region22: #{tpu_custom_call.1} parent=0
    _
  %s6 = ssub.s32 1, %s4
  %s7 = scalar_select 0, %s6, %s4
  // Predicated region
  $region2: #{tpu_custom_call.1} parent=0 // pred_check
    _
  $region3: #{tpu_custom_call.1} parent=0 // pred_check_branch
    %9 = sbr.rel (0) target = $region5
  $region4: #{tpu_custom_call.1} parent=0 // pred_region
    _
  $region5: #{tpu_custom_call.1} parent=0 // pred_fallthru
    _
  // Predicated region
  $region6: #{tpu_custom_call.1} parent=0 // pred_check
    _
  $region7: #{tpu_custom_call.1} parent=0 // pred_check_branch
    %11 = sbr.rel (0) target = $region9
  $region8: #{tpu_custom_call.1} parent=0 // pred_region
    _
  $region9: #{tpu_custom_call.1} parent=0 // pred_fallthru
    _
  // Predicated region
  $region10: #{tpu_custom_call.1} parent=0 // pred_check
    _
  $region11: #{tpu_custom_call.1} parent=0 // pred_check_branch
    %13 = sbr.rel (0) target = $region13
  $region12: #{tpu_custom_call.1} parent=0 // pred_region
    _
  $region13: #{tpu_custom_call.1} parent=0 // pred_fallthru
    _
  %v14 = vld [vmem:[%s2] sm:$0xff]
  %v15 = vld [vmem:[%s1] sm:$0xff]
  %v16 = vld [vmem:[%s0] sm:$0x1]
  %v17 = vlaneseq
  %v18 = vand.u32 %v17, 127
  %19 = vset.pattern.permute.xlu0 0
  %20 = vperm.xlu0 %19, %v15
  %v21 = vpop.permute.xlu0 %20
  %vm22 = vcmp.eq.s32.totalorder %v18, %v21
  %v24 = vlaneseq
  %v25 = vshrl.u32 %v24, 7
  %v26 = vsub.s32 0, %v25
  %v27 = vrot.slane %v16, %v26
  %v29 = vsel %vm22, %v27, 0.0
  %v30 = vsub.f32 %v14, %v29
  %v31 = vsel %vm22, %v30, 0.0
  %vm32 = vcmask 130048
  %v33 = vsel %vm32, %v31, 0.0
  %34 = vadd.xlane.f32.xlu0 %v33
  %v35 = vpop.xlane.xlu0 %34
  %v36 = vsel %vm32, %v30, -inf
  %37 = vmax.xlane.f32.xlu0 %v36
  %v38 = vpop.xlane.xlu0 %37
  %v39 = vsub.f32 %v30, %v38
  %v40 = vmul.f32 %v39, 1.442695
  %v41 = vpow.pop %v40
  %v42 = vsel %vm32, %v41, 0.0
  %43 = vadd.xlane.f32.xlu0 %v42
  %v44 = vpop.xlane.xlu0 %43
  %v45 = vlog2.pop %v44
  %v46 = vmul.f32 %v45, 0.6931472
  %v47 = vadd.f32 %v38, %v46
  %v48 = vsub.f32 %v47, %v35
  %vm49 = vcmask 7168
  %50 = vst.msk [vmem:[%s3] sm:$0xff] %vm49, %v48
  // Predicated region
  $region14: #{tpu_custom_call.1} parent=0 // pred_check
    _
  $region15: #{tpu_custom_call.1} parent=0 // pred_check_branch
    %52 = sbr.rel (0) target = $region17
  $region16: #{tpu_custom_call.1} parent=0 // pred_region
    _
  $region17: #{tpu_custom_call.1} parent=0 // pred_fallthru
    _
  // Predicated region
  $region18: #{tpu_custom_call.1} parent=0 // pred_check
    _
  $region19: #{tpu_custom_call.1} parent=0 // pred_check_branch
    %54 = sbr.rel (0) target = $region21
  $region20: #{tpu_custom_call.1} parent=0 // pred_region
    _
  $region21: #{tpu_custom_call.1} parent=0 // pred_fallthru
    _

</llo_original>
